<compile_context>
chip_gen: v6e
topology: v6e:2x2x1
jax: 0.10.0
libtpu: 0.0.40
codegen_flags: <defaults>
</compile_context>

<pallas_src>
import functools

import jax
import jax.numpy as jnp
from jax.experimental import pallas as pl
from jax.experimental.pallas import tpu as pltpu

LANE = 128  # lane-dense output padding for the 7-wide head


# ----------------------------------------------------------------------------
# Kernels
# ----------------------------------------------------------------------------

def mlp_kernel(x_ref, w1_ref, b1_ref, w2_ref, b2_ref, o_ref):
    # x: (B, D), w1: (D, H), b1: (1, H), w2: (H, LANE), b2: (1, LANE), o: (B, LANE)
    x = x_ref[...]
    h = jnp.dot(x, w1_ref[...], preferred_element_type=jnp.float32) + b1_ref[...]
    h = jnp.maximum(h, 0.0)                                          # ReLU
    logits = jnp.dot(h, w2_ref[...], preferred_element_type=jnp.float32) + b2_ref[...]
    # softmax over dim=0 (batch axis), matching F.softmax(..., dim=0).
    m = jnp.max(logits, axis=0, keepdims=True)
    e = jnp.exp(logits - m)
    denom = jnp.sum(e, axis=0, keepdims=True)
    o_ref[...] = (e / denom).astype(o_ref.dtype)


def mlp_kernel_batched(x_ref, w1_ref, b1_ref, w2_ref, b2_ref, o_ref):
    # x: (N*B, D) slab of N independent forward calls; o: (N, B, LANE).
    # Both matmuls run on the whole slab; the softmax is segmented per call
    # (axis=1 of the (N, B, LANE) view == dim=0 of each call's batch).
    N, B, _ = o_ref.shape
    x = x_ref[...]
    h = jnp.dot(x, w1_ref[...], preferred_element_type=jnp.float32) + b1_ref[...]
    h = jnp.maximum(h, 0.0)
    logits = jnp.dot(h, w2_ref[...], preferred_element_type=jnp.float32) + b2_ref[...]
    logits = logits.reshape(N, B, LANE)            # B == 8 sublanes -> layout-free
    m = jnp.max(logits, axis=1, keepdims=True)
    e = jnp.exp(logits - m)
    denom = jnp.sum(e, axis=1, keepdims=True)
    o_ref[...] = (e / denom).astype(o_ref.dtype)


# ----------------------------------------------------------------------------
# Wrappers
# ----------------------------------------------------------------------------

_VMEM = pl.BlockSpec(memory_space=pltpu.MemorySpace.VMEM)


def prepare_params(w1t, b1, w2t, b2):
    """One-time: zero-pad the O-wide output head to a lane-dense 128 columns."""
    H, O = w2t.shape
    w2p = jnp.zeros((H, LANE), jnp.float32).at[:, :O].set(w2t)
    b2p = jnp.zeros((1, LANE), jnp.float32).at[:, :O].set(b2)
    return w1t, b1, w2p, b2p, O


@functools.partial(jax.jit, static_argnames=("output_dim",))
def mlp_forward(x, w1t, b1, w2p, b2p, output_dim):
    """Single forward call.  Gridless: all operands whole-array in VMEM."""
    B, _ = x.shape
    out = pl.pallas_call(
        mlp_kernel,
        out_shape=jax.ShapeDtypeStruct((B, LANE), jnp.float32),
        in_specs=[_VMEM, _VMEM, _VMEM, _VMEM, _VMEM],
        out_specs=_VMEM,
    )(x, w1t, b1, w2p, b2p)
    return out[:, :output_dim]          # fused into the same jit dispatch


@functools.partial(jax.jit, static_argnames=("output_dim",))
def mlp_forward_batched(xs, w1t, b1, w2p, b2p, output_dim):
    """N stacked forward calls in ONE gridless kernel launch.

    xs: (N, B, D).  Matmuls run on the (N*B, D) slab; the kernel does a
    segmented softmax so each call's dim-0 group is reduced independently.
    """
    N, B, D = xs.shape
    x2d = xs.reshape(N * B, D)
    out = pl.pallas_call(
        mlp_kernel_batched,
        out_shape=jax.ShapeDtypeStruct((N, B, LANE), jnp.float32),
        in_specs=[_VMEM, _VMEM, _VMEM, _VMEM, _VMEM],
        out_specs=_VMEM,
    )(x2d, w1t, b1, w2p, b2p)
    return out[:, :, :output_dim]       # fused into the same jit dispatch


def init_params(key, input_dim, hidden_dim, output_dim):
    """Deterministic init mimicking PyTorch nn.Linear defaults
    (uniform in ±1/sqrt(fan_in)).  Stored transposed vs PyTorch (out, in)."""
    k1, k2, k3, k4 = jax.random.split(key, 4)
    bound1 = 1.0 / jnp.sqrt(jnp.float32(input_dim))
    bound2 = 1.0 / jnp.sqrt(jnp.float32(hidden_dim))
    w1t = jax.random.uniform(k1, (input_dim, hidden_dim), jnp.float32, -bound1, bound1)
    b1 = jax.random.uniform(k2, (1, hidden_dim), jnp.float32, -bound1, bound1)
    w2t = jax.random.uniform(k3, (hidden_dim, output_dim), jnp.float32, -bound2, bound2)
    b2 = jax.random.uniform(k4, (1, output_dim), jnp.float32, -bound2, bound2)
    return w1t, b1, w2t, b2


def _reference(x, w1t, b1, w2t, b2):
    h = jnp.maximum(x @ w1t + b1, 0.0)
    return jax.nn.softmax(h @ w2t + b2, axis=0)


if __name__ == "__main__":
    # config: h = 4, w = 4 -> input_dim = 16; hidden_dim = 32; output_dim = 2 + 5 = 7
    hh, ww, hidden_dim = 4, 4, 32
    input_dim = hh * ww
    output_dim = 2 + 5
    batch = 8
    n_calls = 4

    key = jax.random.PRNGKey(0)
    kx, kxs, kp = jax.random.split(key, 3)
    x = jax.random.normal(kx, (batch, input_dim), jnp.float32)
    xs = jax.random.normal(kxs, (n_calls, batch, input_dim), jnp.float32)
    w1t_raw, b1_raw, w2t_raw, b2_raw = init_params(kp, input_dim, hidden_dim, output_dim)

    # One-time head padding (hoisted out of the per-call path).
    w1t, b1, w2p, b2p, O = prepare_params(w1t_raw, b1_raw, w2t_raw, b2_raw)

    # Single-call path (one jit dispatch: pallas_call + slice fused).
    out = mlp_forward(x, w1t, b1, w2p, b2p, O)
    jax.block_until_ready(out)
    ref = _reference(x, w1t_raw, b1_raw, w2t_raw, b2_raw)
    assert out.shape == (batch, output_dim)
    assert jnp.allclose(out, ref, atol=1e-3, rtol=1e-3)

    # Batched path: N independent forward calls, one gridless launch.
    out_b = mlp_forward_batched(xs, w1t, b1, w2p, b2p, O)
    jax.block_until_ready(out_b)
    ref_b = jax.vmap(lambda xi: _reference(xi, w1t_raw, b1_raw, w2t_raw, b2_raw))(xs)
    assert out_b.shape == (n_calls, batch, output_dim)
    assert jnp.allclose(out_b, ref_b, atol=1e-3, rtol=1e-3)

    print("KERNEL_OK")
</pallas_src>

<mosaic_0001>
module attributes {stable_mosaic.version = 11 : i64} {
  func.func @mlp_kernel(%arg0: memref<8x16xf32, #tpu.memory_space<vmem>>, %arg1: memref<16x32xf32, #tpu.memory_space<vmem>>, %arg2: memref<1x32xf32, #tpu.memory_space<vmem>>, %arg3: memref<32x128xf32, #tpu.memory_space<vmem>>, %arg4: memref<1x128xf32, #tpu.memory_space<vmem>>, %arg5: memref<8x128xf32, #tpu.memory_space<vmem>>) attributes {dimension_semantics = [], scalar_prefetch = 0 : i64, scratch_operands = 0 : i64, tpu.core_type = #tpu.core_type<tc>} {
    %c0 = arith.constant 0 : index
    %c0_0 = arith.constant 0 : index
    %0 = vector.load %arg0[%c0, %c0_0] : memref<8x16xf32, #tpu.memory_space<vmem>>, vector<8x16xf32>
    %c0_1 = arith.constant 0 : index
    %c0_2 = arith.constant 0 : index
    %1 = vector.load %arg1[%c0_1, %c0_2] : memref<16x32xf32, #tpu.memory_space<vmem>>, vector<16x32xf32>
    %cst = arith.constant dense<0.000000e+00> : vector<8x32xf32>
    %2 = tpu.matmul %0, %1, %cst {dimension_numbers = #tpu.dot_dimension_numbers<[1], [0], [0], [1], [0, 0, 1, 1], [], []>} : vector<8x16xf32>, vector<16x32xf32>, vector<8x32xf32> -> vector<8x32xf32>
    %c0_3 = arith.constant 0 : index
    %c0_4 = arith.constant 0 : index
    %3 = vector.load %arg2[%c0_3, %c0_4] : memref<1x32xf32, #tpu.memory_space<vmem>>, vector<1x32xf32>
    %4 = vector.broadcast %3 : vector<1x32xf32> to vector<8x32xf32>
    %5 = arith.addf %2, %4 : vector<8x32xf32>
    %cst_5 = arith.constant 0.000000e+00 : f32
    %6 = vector.broadcast %cst_5 : f32 to vector<8x32xf32>
    %7 = arith.maximumf %5, %6 : vector<8x32xf32>
    %c0_6 = arith.constant 0 : index
    %c0_7 = arith.constant 0 : index
    %8 = vector.load %arg3[%c0_6, %c0_7] : memref<32x128xf32, #tpu.memory_space<vmem>>, vector<32x128xf32>
    %cst_8 = arith.constant dense<0.000000e+00> : vector<8x128xf32>
    %9 = tpu.matmul %7, %8, %cst_8 {dimension_numbers = #tpu.dot_dimension_numbers<[1], [0], [0], [1], [0, 0, 1, 1], [], []>} : vector<8x32xf32>, vector<32x128xf32>, vector<8x128xf32> -> vector<8x128xf32>
    %c0_9 = arith.constant 0 : index
    %c0_10 = arith.constant 0 : index
    %10 = vector.load %arg4[%c0_9, %c0_10] : memref<1x128xf32, #tpu.memory_space<vmem>>, vector<1x128xf32>
    %11 = vector.broadcast %10 : vector<1x128xf32> to vector<8x128xf32>
    %12 = arith.addf %9, %11 : vector<8x128xf32>
    %cst_11 = arith.constant dense<0xFF800000> : vector<128xf32>
    %13 = vector.multi_reduction <maximumf>, %12, %cst_11 [0] : vector<8x128xf32> to vector<128xf32>
    %14 = vector.shape_cast %13 : vector<128xf32> to vector<1x128xf32>
    %15 = vector.broadcast %14 : vector<1x128xf32> to vector<8x128xf32>
    %16 = arith.subf %12, %15 : vector<8x128xf32>
    %17 = math.exp %16 : vector<8x128xf32>
    %cst_12 = arith.constant dense<0.000000e+00> : vector<128xf32>
    %18 = vector.multi_reduction <add>, %17, %cst_12 [0] : vector<8x128xf32> to vector<128xf32>
    %19 = vector.shape_cast %18 : vector<128xf32> to vector<1x128xf32>
    %20 = vector.broadcast %19 : vector<1x128xf32> to vector<8x128xf32>
    %21 = arith.divf %17, %20 : vector<8x128xf32>
    %c0_13 = arith.constant 0 : index
    %c0_14 = arith.constant 0 : index
    %22 = vector.load %arg5[%c0_13, %c0_14] : memref<8x128xf32, #tpu.memory_space<vmem>>, vector<8x128xf32>
    tpu.vector_store %arg5[%c0_13, %c0_14], %21 {strides = array<i32>} : memref<8x128xf32, #tpu.memory_space<vmem>>, vector<8x128xf32>,
    return
  }
}

</mosaic_0001>

<llo_original>
// kernel: mlp_forward.1
$region0: #{mlp_forward.1}
  #allocation0 [shape = 'u32[]', space=smem, size = 0x4, offset = 0x4, fixed_abs, tag = 'smem constant byte address 0x4 - core index']
  #allocation1 [shape = 'u32[144,128]{1,0:T(1,128)}', space=vmem, size = 0x12000, scoped, tag = 'internal scratch']
  %s0 = inlined_call_operand.hbm [shape: f32[8,16], index: 0, kind: input, shape index: {}]
  %s1 = inlined_call_operand.hbm [shape: f32[16,32], index: 1, kind: input, shape index: {}]
  %s2 = inlined_call_operand.vmem [shape: f32[1,32], index: 2, kind: input, shape index: {}]
  %s3 = inlined_call_operand.hbm [shape: f32[32,128], index: 3, kind: input, shape index: {}]
  %s4 = inlined_call_operand.vmem [shape: f32[1,128], index: 4, kind: input, shape index: {}]
  %s5 = inlined_call_operand.hbm [shape: f32[8,128], index: 5, kind: output, shape index: {}]
  %s6 = sld [smem:[#allocation0]]
  $region42: #{mlp_forward.1} parent=0
    _
  %s8 = ssub.s32 1, %s6
  %s9 = scalar_select 0, %s8, %s6
  $region1: #{mlp_forward.1} parent=0
    #allocation2 [shape = 'u8[4096]{0}', space=vmem, size = 0x1000, scoped, tag = 'input window, operand 0, single buffered']
    #allocation3 [shape = 's32[1]{0}', space=sflag, size = 0x4, scoped, tag = 'scoped memory for mlp_forward.1']
    #allocation4 [shape = 's32[1]{0}', space=sflag, size = 0x4, scoped, tag = 'scoped memory for mlp_forward.1']
    #allocation5 [shape = 'u8[8192]{0}', space=vmem, size = 0x2000, scoped, tag = 'input window, operand 1, single buffered']
    #allocation6 [shape = 's32[1]{0}', space=sflag, size = 0x4, scoped, tag = 'scoped memory for mlp_forward.1']
    #allocation7 [shape = 'u8[16384]{0}', space=vmem, size = 0x4000, scoped, tag = 'input window, operand 3, single buffered']
    #allocation8 [shape = 'u8[4096]{0}', space=vmem, size = 0x1000, scoped, tag = 'output window, operand 0, single buffered']
    %10 = vsyncpa [#allocation3], 0
    %11 = vsyncpa [#allocation6], 0
    %12 = vsyncpa [#allocation4], 0
    // Predicated region
    $region2: #{mlp_forward.1} parent=1 // pred_check
      _
    $region3: #{mlp_forward.1} parent=1 // pred_check_branch
      %14 = sbr.rel (0) target = $region5
    $region4: #{mlp_forward.1} parent=1 // pred_region
      %s16 = ssub.s32 128, 128
      %17 = vsyncadd [#allocation3], %s16
      %s19 = sshll.u32 [#allocation2], 4
      %s20 = int_to_ptr.vmem [resolvable:$true] %s19
      %22 = dma.hbm_to_vmem [thread:$0]  %s0, 128, %s20, [#allocation3]
    $region5: #{mlp_forward.1} parent=1 // pred_fallthru
      _
    // Predicated region
    $region6: #{mlp_forward.1} parent=1 // pred_check
      _
    $region7: #{mlp_forward.1} parent=1 // pred_check_branch
      %24 = sbr.rel (0) target = $region9
    $region8: #{mlp_forward.1} parent=1 // pred_region
      %s26 = ssub.s32 256, 256
      %27 = vsyncadd [#allocation6], %s26
      %s28 = sshll.u32 [#allocation5], 4
      %s29 = int_to_ptr.vmem [resolvable:$true] %s28
      %34 = dma.hbm_to_vmem [thread:$0]  %s1, 256, %s29, [#allocation6], 128, 128, 8
    $region9: #{mlp_forward.1} parent=1 // pred_fallthru
      _
    // Predicated region
    $region10: #{mlp_forward.1} parent=1 // pred_check
      _
    $region11: #{mlp_forward.1} parent=1 // pred_check_branch
      %36 = sbr.rel (0) target = $region13
    $region12: #{mlp_forward.1} parent=1 // pred_region
      _
    $region13: #{mlp_forward.1} parent=1 // pred_fallthru
      _
    // Predicated region
    $region14: #{mlp_forward.1} parent=1 // pred_check
      _
    $region15: #{mlp_forward.1} parent=1 // pred_check_branch
      %38 = sbr.rel (0) target = $region17
    $region16: #{mlp_forward.1} parent=1 // pred_region
      %s40 = ssub.s32 512, 512
      %41 = vsyncadd [#allocation6], %s40
      %s42 = sshll.u32 [#allocation7], 4
      %s43 = int_to_ptr.vmem [resolvable:$true] %s42
      %48 = dma.hbm_to_vmem [thread:$0]  %s3, 512, %s43, [#allocation6], 128, 128, 8
    $region17: #{mlp_forward.1} parent=1 // pred_fallthru
      _
    // Predicated region
    $region18: #{mlp_forward.1} parent=1 // pred_check
      _
    $region19: #{mlp_forward.1} parent=1 // pred_check_branch
      %50 = sbr.rel (0) target = $region21
    $region20: #{mlp_forward.1} parent=1 // pred_region
      _
    $region21: #{mlp_forward.1} parent=1 // pred_fallthru
      _
    // Predicated region
    $region22: #{mlp_forward.1} parent=1 // pred_check
      _
    $region23: #{mlp_forward.1} parent=1 // pred_check_branch
      %52 = sbr.rel (0) target = $region25
    $region24: #{mlp_forward.1} parent=1 // pred_region
      %53 = dma.done [#allocation3], 128
    $region25: #{mlp_forward.1} parent=1 // pred_fallthru
      _
    // Predicated region
    $region26: #{mlp_forward.1} parent=1 // pred_check
      _
    $region27: #{mlp_forward.1} parent=1 // pred_check_branch
      %55 = sbr.rel (0) target = $region29
    $region28: #{mlp_forward.1} parent=1 // pred_region
      %56 = dma.done [#allocation6], 256
    $region29: #{mlp_forward.1} parent=1 // pred_fallthru
      _
    // Predicated region
    $region30: #{mlp_forward.1} parent=1 // pred_check
      _
    $region31: #{mlp_forward.1} parent=1 // pred_check_branch
      %58 = sbr.rel (0) target = $region33
    $region32: #{mlp_forward.1} parent=1 // pred_region
      %59 = dma.done [#allocation6], 512
    $region33: #{mlp_forward.1} parent=1 // pred_fallthru
      _
    %v60 = vld [vmem:[#allocation2] sm:$0xff]
    %v61 = vld [vmem:[#allocation5] sm:$0xff]
    %v62 = vld [vmem:[#allocation5 + $0x8] sm:$0xff]
    %v63 = vld [vmem:[%s2] sm:$0x1]
    %v65 = vlaneseq
    %v66 = vshrl.u32 %v65, 7
    %v67 = vsub.s32 0, %v66
    %v68 = vrot.slane %v63, %v67
    %vm70 = vcmask 130048
    %v72 = vsel %vm70, %v60, 0
    %74 = vmatprep.subr.mxu0 0.0
    %75 = vmatpush1.msra.mxu0 0.0
    %76 = vmatprep.subr.mxu0 0.0
    %77 = vmatpush1.msra.mxu0 0.0
    %78 = vmatprep.subr.mxu0 0.0
    %79 = vmatpush1.msra.mxu0 0.0
    %80 = vmatprep.subr.mxu0 0.0
    %81 = vmatpush1.msra.mxu0 0.0
    %82 = vmatprep.subr.mxu0 0.0
    %83 = vmatpush1.msra.mxu0 0.0
    %84 = vmatprep.subr.mxu0 0.0
    %85 = vmatpush1.msra.mxu0 0.0
    %86 = vmatprep.subr.mxu0 0.0
    %87 = vmatpush1.msra.mxu0 0.0
    %88 = vmatprep.subr.mxu0 0.0
    %89 = vmatpush1.msra.mxu0 0.0
    %90 = vmatprep.subr.mxu0 0.0
    %91 = vmatpush1.msra.mxu0 0.0
    %92 = vmatprep.subr.mxu0 0.0
    %93 = vmatpush1.msra.mxu0 0.0
    %94 = vmatprep.subr.mxu0 0.0
    %95 = vmatpush1.msra.mxu0 0.0
    %96 = vmatprep.subr.mxu0 0.0
    %97 = vmatpush1.msra.mxu0 0.0
    %98 = vmatprep.subr.mxu0 0.0
    %99 = vmatpush1.msra.mxu0 0.0
    %100 = vmatprep.subr.mxu0 0.0
    %101 = vmatpush1.msra.mxu0 0.0
    %102 = vmatprep.subr.mxu0 0.0
    %103 = vmatpush1.msra.mxu0 %v62
    %104 = vmatprep.subr.mxu0 0.0
    %105 = vmatpush1.msra.mxu0 %v61
    %106 = vmatprep.subr.mxu0 0.0
    %107 = vmatpush2.msra.mxu0 0.0
    %108 = vmatprep.subr.mxu0 0.0
    %109 = vmatpush2.msra.mxu0 0.0
    %110 = vmatprep.subr.mxu0 0.0
    %111 = vmatpush2.msra.mxu0 0.0
    %112 = vmatprep.subr.mxu0 0.0
    %113 = vmatpush2.msra.mxu0 0.0
    %114 = vmatprep.subr.mxu0 0.0
    %115 = vmatpush2.msra.mxu0 0.0
    %116 = vmatprep.subr.mxu0 0.0
    %117 = vmatpush2.msra.mxu0 0.0
    %118 = vmatprep.subr.mxu0 0.0
    %119 = vmatpush2.msra.mxu0 0.0
    %120 = vmatprep.subr.mxu0 0.0
    %121 = vmatpush2.msra.mxu0 0.0
    %122 = vmatprep.subr.mxu0 0.0
    %123 = vmatpush2.msra.mxu0 0.0
    %124 = vmatprep.subr.mxu0 0.0
    %125 = vmatpush2.msra.mxu0 0.0
    %126 = vmatprep.subr.mxu0 0.0
    %127 = vmatpush2.msra.mxu0 0.0
    %128 = vmatprep.subr.mxu0 0.0
    %129 = vmatpush2.msra.mxu0 0.0
    %130 = vmatprep.subr.mxu0 0.0
    %131 = vmatpush2.msra.mxu0 0.0
    %132 = vmatprep.subr.mxu0 0.0
    %133 = vmatpush2.msra.mxu0 0.0
    %134 = vmatprep.subr.mxu0 0.0
    %135 = vmatpush2.msra.mxu0 0.0
    %136 = vmatprep.subr.mxu0 0.0
    %137 = vmatpush2.msra.mxu0 0.0
    %138 = vmatprep.mubr.f32.mxu0 0.0
    %139 = vmatmul.mubr.f32.gmra.mxu0 %v72
    %v140 = vpop.f32.mrf.mxu0
    %v141 = vadd.f32 %v68, %v140
    %v142 = vpop.f32.mrf.mxu0
    %143 = vdwg.mxu0
    %v144 = vmax.f32 %v141, 0.0
    %v145 = vld [vmem:[#allocation7] sm:$0xff]
    %v146 = vld [vmem:[#allocation7 + $0x8] sm:$0xff]
    %v147 = vld [vmem:[#allocation7 + $0x10] sm:$0xff]
    %v148 = vld [vmem:[#allocation7 + $0x18] sm:$0xff]
    %v149 = vld [vmem:[%s4] sm:$0x1]
    %v151 = vlaneseq
    %v152 = vshrl.u32 %v151, 7
    %v153 = vsub.s32 0, %v152
    %v154 = vrot.slane %v149, %v153
    %vm156 = vcmask 261120
    %v158 = vsel %vm156, %v144, 0
    %160 = vmatprep.subr.mxu0 0.0
    %161 = vmatpush1.msra.mxu0 0.0
    %162 = vmatprep.subr.mxu0 0.0
    %163 = vmatpush1.msra.mxu0 0.0
    %164 = vmatprep.subr.mxu0 0.0
    %165 = vmatpush1.msra.mxu0 0.0
    %166 = vmatprep.subr.mxu0 0.0
    %167 = vmatpush1.msra.mxu0 0.0
    %168 = vmatprep.subr.mxu0 0.0
    %169 = vmatpush1.msra.mxu0 0.0
    %170 = vmatprep.subr.mxu0 0.0
    %171 = vmatpush1.msra.mxu0 0.0
    %172 = vmatprep.subr.mxu0 0.0
    %173 = vmatpush1.msra.mxu0 0.0
    %174 = vmatprep.subr.mxu0 0.0
    %175 = vmatpush1.msra.mxu0 0.0
    %176 = vmatprep.subr.mxu0 0.0
    %177 = vmatpush1.msra.mxu0 0.0
    %178 = vmatprep.subr.mxu0 0.0
    %179 = vmatpush1.msra.mxu0 0.0
    %180 = vmatprep.subr.mxu0 0.0
    %181 = vmatpush1.msra.mxu0 0.0
    %182 = vmatprep.subr.mxu0 0.0
    %183 = vmatpush1.msra.mxu0 0.0
    %184 = vmatprep.subr.mxu0 0.0
    %185 = vmatpush1.msra.mxu0 %v148
    %186 = vmatprep.subr.mxu0 0.0
    %187 = vmatpush1.msra.mxu0 %v147
    %188 = vmatprep.subr.mxu0 0.0
    %189 = vmatpush1.msra.mxu0 %v146
    %190 = vmatprep.subr.mxu0 0.0
    %191 = vmatpush1.msra.mxu0 %v145
    %192 = vmatprep.subr.mxu0 0.0
    %193 = vmatpush2.msra.mxu0 0.0
    %194 = vmatprep.subr.mxu0 0.0
    %195 = vmatpush2.msra.mxu0 0.0
    %196 = vmatprep.subr.mxu0 0.0
    %197 = vmatpush2.msra.mxu0 0.0
    %198 = vmatprep.subr.mxu0 0.0
    %199 = vmatpush2.msra.mxu0 0.0
    %200 = vmatprep.subr.mxu0 0.0
    %201 = vmatpush2.msra.mxu0 0.0
    %202 = vmatprep.subr.mxu0 0.0
    %203 = vmatpush2.msra.mxu0 0.0
    %204 = vmatprep.subr.mxu0 0.0
    %205 = vmatpush2.msra.mxu0 0.0
    %206 = vmatprep.subr.mxu0 0.0
    %207 = vmatpush2.msra.mxu0 0.0
    %208 = vmatprep.subr.mxu0 0.0
    %209 = vmatpush2.msra.mxu0 0.0
    %210 = vmatprep.subr.mxu0 0.0
    %211 = vmatpush2.msra.mxu0 0.0
    %212 = vmatprep.subr.mxu0 0.0
    %213 = vmatpush2.msra.mxu0 0.0
    %214 = vmatprep.subr.mxu0 0.0
    %215 = vmatpush2.msra.mxu0 0.0
    %216 = vmatprep.subr.mxu0 0.0
    %217 = vmatpush2.msra.mxu0 0.0
    %218 = vmatprep.subr.mxu0 0.0
    %219 = vmatpush2.msra.mxu0 0.0
    %220 = vmatprep.subr.mxu0 0.0
    %221 = vmatpush2.msra.mxu0 0.0
    %222 = vmatprep.subr.mxu0 0.0
    %223 = vmatpush2.msra.mxu0 0.0
    %224 = vmatprep.mubr.f32.mxu0 0.0
    %225 = vmatmul.mubr.f32.gmra.mxu0 %v158
    %v226 = vpop.f32.mrf.mxu0
    %v227 = vadd.f32 %v154, %v226
    %v228 = vpop.f32.mrf.mxu0
    %229 = vdwg.mxu0
    %v230 = vrot.slane %v227, 4
    %v231 = vmax.f32 %v227, %v230
    %v232 = vrot.slane %v231, 2
    %v233 = vmax.f32 %v231, %v232
    %v234 = vrot.slane %v233, 1
    %v235 = vmax.f32 %v233, %v234
    %v236 = vsub.f32 %v227, %v235
    %v237 = vmul.f32 %v236, 1.442695
    %v238 = vpow.pop %v237
    %v239 = vrot.slane %v238, 4
    %v240 = vadd.f32 %v238, %v239
    %v241 = vrot.slane %v240, 2
    %v242 = vadd.f32 %v240, %v241
    %v243 = vrot.slane %v242, 1
    %v244 = vadd.f32 %v242, %v243
    %v245 = vrcp.pop %v244
    %v246 = vmul.f32 %v238, %v245
    %247 = vst [vmem:[#allocation8] sm:$0xff] %v246
    // Predicated region
    $region34: #{mlp_forward.1} parent=1 // pred_check
      _
    $region35: #{mlp_forward.1} parent=1 // pred_check_branch
      %249 = sbr.rel (0) target = $region37
    $region36: #{mlp_forward.1} parent=1 // pred_region
      %s251 = ssub.s32 128, 128
      %252 = vsyncadd [#allocation4], %s251
      %s254 = sshll.u32 [#allocation8], 4
      %s255 = int_to_ptr.vmem [resolvable:$true] %s254
      %257 = dma.vmem_to_hbm [thread:$0]  %s255, 128, %s5, [#allocation4]
    $region37: #{mlp_forward.1} parent=1 // pred_fallthru
      _
    // Predicated region
    $region38: #{mlp_forward.1} parent=1 // pred_check
      _
    $region39: #{mlp_forward.1} parent=1 // pred_check_branch
      %259 = sbr.rel (0) target = $region41
    $region40: #{mlp_forward.1} parent=1 // pred_region
      %260 = dma.done [#allocation4], 128
    $region41: #{mlp_forward.1} parent=1 // pred_fallthru
      _
    %261 = vsyncpa [#allocation3], 1
    %262 = vsyncpa [#allocation6], 1
    %263 = vsyncpa [#allocation4], 1

</llo_original>
